<compile_context>
chip_gen: v5e
topology: v5e:2x2
jax: 0.10.0
libtpu: 0.0.40
codegen_flags: <defaults>
</compile_context>

<pallas_src>
import functools

import jax
import jax.numpy as jnp
from jax.experimental import pallas as pl
from jax.experimental.pallas import tpu as pltpu


_SUB = 128  # lanes per in-kernel sub-chunk; always divides block_b (mult. of 128)


def _mlp_kernel(x_ref, w1_ref, b1_ref, w2_ref, b2_ref, w3_ref, b3_ref, o_ref):
    """One batch tile of the MLP.

    x_ref : (block_b, 30)  f32  activations in natural row-major layout
    w1_ref: (64, 30), w2_ref: (32, 64), w3_ref: (2, 32)   f32 (out, in) weights
    b1_ref: (64, 1),  b2_ref: (32, 1),  b3_ref: (1, 2)    f32 biases
    o_ref : (block_b, 2)   f32  logits
    """
    block_b = x_ref.shape[0]
    n_sub = block_b // _SUB

    w1 = w1_ref[...]
    b1 = b1_ref[...]
    w2 = w2_ref[...]
    b2 = b2_ref[...]
    w3 = w3_ref[...]
    b3 = b3_ref[...]

    hi_prec = jax.lax.Precision.HIGHEST

    # Static unrolled loop over 128-lane sub-chunks keeps h1/h2 vreg-resident.
    for c in range(n_sub):
        lo, hi = c * _SUB, (c + 1) * _SUB

        # In-kernel transpose (XLU): batch goes onto the lane axis.
        xT = x_ref[lo:hi, :].T                                   # (30, SUB)

        # fc1 + ReLU : (64, 30) @ (30, SUB) on the MXU, f32 accumulation.
        h1 = jnp.dot(w1, xT, preferred_element_type=jnp.float32,
                     precision=hi_prec)
        h1 = jnp.maximum(h1 + b1, 0.0)                           # (64, SUB)

        # fc2 + ReLU : (32, 64) @ (64, SUB).
        h2 = jnp.dot(w2, h1, preferred_element_type=jnp.float32,
                     precision=hi_prec)
        h2 = jnp.maximum(h2 + b2, 0.0)                           # (32, SUB)

        # fc3 on the VPU/XLU: 2 output rows, 32 MAC terms each.  Produces the
        # (SUB, 2) layout needed for the store directly.
        h2T = h2.T                                               # (SUB, 32)
        o0 = jnp.sum(h2T * w3[0:1, :], axis=1, keepdims=True)    # (SUB, 1)
        o1 = jnp.sum(h2T * w3[1:2, :], axis=1, keepdims=True)    # (SUB, 1)
        o_ref[lo:hi, :] = jnp.concatenate([o0, o1], axis=1) + b3


def _round_up(v, m):
    return ((v + m - 1) // m) * m


def _pick_block_b(B, max_block=1024):
    """Adaptive batch tile: multiple of 128, <= max_block, >= 2 grid steps
    whenever the batch is large enough (so v7x megacore gets both TCs)."""
    bb = _round_up(max(B, 1), 128)
    if bb <= 256:
        return bb
    return max(256, min(max_block, _round_up((B + 1) // 2, 128)))


def prepare_params(params):
    """One-time conversion of nn.Linear-style params ((in,out) weights) to the
    kernel layout.  Hoisted out of the per-call path."""
    return dict(
        w1=jnp.asarray(params["w1"]).T.astype(jnp.float32),          # (64, 30)
        b1=jnp.asarray(params["b1"]).reshape(-1, 1).astype(jnp.float32),
        w2=jnp.asarray(params["w2"]).T.astype(jnp.float32),          # (32, 64)
        b2=jnp.asarray(params["b2"]).reshape(-1, 1).astype(jnp.float32),
        w3=jnp.asarray(params["w3"]).T.astype(jnp.float32),          # (2, 32)
        b3=jnp.asarray(params["b3"]).reshape(1, -1).astype(jnp.float32),  # (1, 2)
    )


@functools.partial(jax.jit, static_argnames=("block_b",))
def defense_nn_forward(x, kparams, block_b=None):
    """x: (B, 30) float32.  kparams: output of prepare_params()."""
    B, D_in = x.shape
    w1, b1 = kparams["w1"], kparams["b1"]
    w2, b2 = kparams["w2"], kparams["b2"]
    w3, b3 = kparams["w3"], kparams["b3"]
    H1, H2, D_out = w1.shape[0], w2.shape[0], w3.shape[0]

    if block_b is None:
        block_b = _pick_block_b(B)

    B_pad = _round_up(B, block_b)
    x_p = x if B_pad == B else jnp.pad(x, ((0, B_pad - B), (0, 0)))
    grid = (B_pad // block_b,)

    full = lambda shape: pl.BlockSpec(shape, lambda i: (0, 0))

    flops = 2 * B_pad * (D_in * H1 + H1 * H2 + H2 * D_out)
    bytes_accessed = (
        B_pad * D_in * 4                                        # streamed x
        + (D_in * H1 + H1 * H2 + H2 * D_out) * 4                # resident weights
        + (H1 + H2 + D_out) * 4                                 # biases
        + B_pad * D_out * 4                                     # logits out
    )

    out = pl.pallas_call(
        _mlp_kernel,
        out_shape=jax.ShapeDtypeStruct((B_pad, D_out), jnp.float32),
        grid_spec=pl.GridSpec(
            grid=grid,
            in_specs=[
                pl.BlockSpec((block_b, D_in), lambda i: (i, 0)),  # x tile (streamed)
                full(w1.shape), full(b1.shape),
                full(w2.shape), full(b2.shape),
                full(w3.shape), full(b3.shape),
            ],
            out_specs=pl.BlockSpec((block_b, D_out), lambda i: (i, 0)),
        ),
        compiler_params=pltpu.CompilerParams(
            dimension_semantics=("parallel",),
        ),
        cost_estimate=pl.CostEstimate(
            flops=flops, transcendentals=0, bytes_accessed=bytes_accessed),
    )(x_p, w1, b1, w2, b2, w3, b3)

    return out if B_pad == B else out[:B]


def init_params(key):
    """Deterministic init mirroring nn.Linear shapes (stored as (in, out))."""
    dims = [(30, 64), (64, 32), (32, 2)]
    params = {}
    for idx, (d_in, d_out) in enumerate(dims, start=1):
        key, kw, kb = jax.random.split(key, 3)
        bound = 1.0 / jnp.sqrt(jnp.float32(d_in))
        params[f"w{idx}"] = jax.random.uniform(
            kw, (d_in, d_out), jnp.float32, minval=-bound, maxval=bound)
        params[f"b{idx}"] = jax.random.uniform(
            kb, (d_out,), jnp.float32, minval=-bound, maxval=bound)
    return params


def reference_forward(x, params):
    h1 = jnp.maximum(x @ params["w1"] + params["b1"], 0.0)
    h2 = jnp.maximum(h1 @ params["w2"] + params["b2"], 0.0)
    return h2 @ params["w3"] + params["b3"]


if __name__ == "__main__":
    key = jax.random.PRNGKey(0)
    key, kx, kp = jax.random.split(key, 3)

    params = init_params(kp)
    kparams = prepare_params(params)   # one-time weight layout/casting

    # Small batch (single 128-lane tile, exercises batch padding).
    x_small = jax.random.normal(kx, (8, 30), dtype=jnp.float32)
    ref_small = reference_forward(x_small, params)
    out_small = jax.block_until_ready(defense_nn_forward(x_small, kparams))
    assert out_small.shape == (8, 2), out_small.shape
    assert jnp.allclose(out_small, ref_small, atol=1e-4, rtol=1e-4), "small mismatch"

    # Larger, non-multiple batch -> adaptive block_b (384) and a 2-step grid.
    key, kx2 = jax.random.split(key)
    x_big = jax.random.normal(kx2, (600, 30), dtype=jnp.float32)
    ref_big = reference_forward(x_big, params)
    out_big = jax.block_until_ready(defense_nn_forward(x_big, kparams))
    assert out_big.shape == (600, 2), out_big.shape
    assert jnp.allclose(out_big, ref_big, atol=1e-4, rtol=1e-4), "grid mismatch"

    print("KERNEL_OK")
</pallas_src>

<mosaic_0001>
module attributes {stable_mosaic.version = 11 : i64} {
  func.func @_mlp_kernel(%arg0: i32, %arg1: memref<128x30xf32, #tpu.memory_space<vmem>>, %arg2: memref<64x30xf32, #tpu.memory_space<vmem>>, %arg3: memref<64x1xf32, #tpu.memory_space<vmem>>, %arg4: memref<32x64xf32, #tpu.memory_space<vmem>>, %arg5: memref<32x1xf32, #tpu.memory_space<vmem>>, %arg6: memref<2x32xf32, #tpu.memory_space<vmem>>, %arg7: memref<1x2xf32, #tpu.memory_space<vmem>>, %arg8: memref<128x2xf32, #tpu.memory_space<vmem>>) attributes {dimension_semantics = [#tpu.dimension_semantics<parallel>], iteration_bounds = array<i64: 1>, scalar_prefetch = 0 : i64, scratch_operands = 0 : i64, tpu.core_type = #tpu.core_type<tc>, window_params = [{transform_indices = @transform_0, window_bounds = array<i64: 128, 30>}, {pipeline_mode = #tpu.pipeline_mode<synchronous>, transform_indices = @transform_1, window_bounds = array<i64: 64, 30>}, {pipeline_mode = #tpu.pipeline_mode<synchronous>, transform_indices = @transform_2, window_bounds = array<i64: 64, 1>}, {pipeline_mode = #tpu.pipeline_mode<synchronous>, transform_indices = @transform_3, window_bounds = array<i64: 32, 64>}, {pipeline_mode = #tpu.pipeline_mode<synchronous>, transform_indices = @transform_4, window_bounds = array<i64: 32, 1>}, {pipeline_mode = #tpu.pipeline_mode<synchronous>, transform_indices = @transform_5, window_bounds = array<i64: 2, 32>}, {pipeline_mode = #tpu.pipeline_mode<synchronous>, transform_indices = @transform_6, window_bounds = array<i64: 1, 2>}, {transform_indices = @transform_7, window_bounds = array<i64: 128, 2>}]} {
    %c0 = arith.constant 0 : index
    %c0_0 = arith.constant 0 : index
    %0 = vector.load %arg2[%c0, %c0_0] : memref<64x30xf32, #tpu.memory_space<vmem>>, vector<64x30xf32>
    %c0_1 = arith.constant 0 : index
    %c0_2 = arith.constant 0 : index
    %1 = vector.load %arg3[%c0_1, %c0_2] : memref<64x1xf32, #tpu.memory_space<vmem>>, vector<64x1xf32>
    %c0_3 = arith.constant 0 : index
    %c0_4 = arith.constant 0 : index
    %2 = vector.load %arg4[%c0_3, %c0_4] : memref<32x64xf32, #tpu.memory_space<vmem>>, vector<32x64xf32>
    %c0_5 = arith.constant 0 : index
    %c0_6 = arith.constant 0 : index
    %3 = vector.load %arg5[%c0_5, %c0_6] : memref<32x1xf32, #tpu.memory_space<vmem>>, vector<32x1xf32>
    %c0_7 = arith.constant 0 : index
    %c0_8 = arith.constant 0 : index
    %4 = vector.load %arg6[%c0_7, %c0_8] : memref<2x32xf32, #tpu.memory_space<vmem>>, vector<2x32xf32>
    %c0_9 = arith.constant 0 : index
    %c0_10 = arith.constant 0 : index
    %5 = vector.load %arg7[%c0_9, %c0_10] : memref<1x2xf32, #tpu.memory_space<vmem>>, vector<1x2xf32>
    %c0_11 = arith.constant 0 : index
    %c0_12 = arith.constant 0 : index
    %6 = vector.load %arg1[%c0_11, %c0_12] : memref<128x30xf32, #tpu.memory_space<vmem>>, vector<128x30xf32>
    %7 = tpu.transpose %6, [1, 0] : vector<128x30xf32> -> vector<30x128xf32>
    %cst = arith.constant dense<0.000000e+00> : vector<64x128xf32>
    %8 = tpu.matmul %0, %7, %cst {dimension_numbers = #tpu.dot_dimension_numbers<[1], [0], [0], [1], [0, 0, 1, 1], [], []>, precision = #tpu.contract_precision<fp32>} : vector<64x30xf32>, vector<30x128xf32>, vector<64x128xf32> -> vector<64x128xf32>
    %9 = vector.broadcast %1 : vector<64x1xf32> to vector<64x128xf32>
    %10 = arith.addf %8, %9 : vector<64x128xf32>
    %cst_13 = arith.constant 0.000000e+00 : f32
    %11 = vector.broadcast %cst_13 : f32 to vector<64x128xf32>
    %12 = arith.maximumf %10, %11 : vector<64x128xf32>
    %cst_14 = arith.constant dense<0.000000e+00> : vector<32x128xf32>
    %13 = tpu.matmul %2, %12, %cst_14 {dimension_numbers = #tpu.dot_dimension_numbers<[1], [0], [0], [1], [0, 0, 1, 1], [], []>, precision = #tpu.contract_precision<fp32>} : vector<32x64xf32>, vector<64x128xf32>, vector<32x128xf32> -> vector<32x128xf32>
    %14 = vector.broadcast %3 : vector<32x1xf32> to vector<32x128xf32>
    %15 = arith.addf %13, %14 : vector<32x128xf32>
    %cst_15 = arith.constant 0.000000e+00 : f32
    %16 = vector.broadcast %cst_15 : f32 to vector<32x128xf32>
    %17 = arith.maximumf %15, %16 : vector<32x128xf32>
    %18 = tpu.transpose %17, [1, 0] : vector<32x128xf32> -> vector<128x32xf32>
    %19 = vector.extract_strided_slice %4 {offsets = [0, 0], sizes = [1, 32], strides = [1, 1]} : vector<2x32xf32> to vector<1x32xf32>
    %20 = vector.broadcast %19 : vector<1x32xf32> to vector<128x32xf32>
    %21 = arith.mulf %18, %20 : vector<128x32xf32>
    %cst_16 = arith.constant dense<0.000000e+00> : vector<128xf32>
    %22 = vector.multi_reduction <add>, %21, %cst_16 [1] : vector<128x32xf32> to vector<128xf32>
    %23 = vector.shape_cast %22 : vector<128xf32> to vector<128x1xf32>
    %24 = vector.extract_strided_slice %4 {offsets = [1, 0], sizes = [1, 32], strides = [1, 1]} : vector<2x32xf32> to vector<1x32xf32>
    %25 = vector.broadcast %24 : vector<1x32xf32> to vector<128x32xf32>
    %26 = arith.mulf %18, %25 : vector<128x32xf32>
    %cst_17 = arith.constant dense<0.000000e+00> : vector<128xf32>
    %27 = vector.multi_reduction <add>, %26, %cst_17 [1] : vector<128x32xf32> to vector<128xf32>
    %28 = vector.shape_cast %27 : vector<128xf32> to vector<128x1xf32>
    %29 = tpu.concatenate %23, %28 in 1 : vector<128x1xf32>, vector<128x1xf32> -> vector<128x2xf32>
    %30 = vector.broadcast %5 : vector<1x2xf32> to vector<128x2xf32>
    %31 = arith.addf %29, %30 : vector<128x2xf32>
    %c0_18 = arith.constant 0 : index
    %c0_19 = arith.constant 0 : index
    %32 = vector.load %arg8[%c0_18, %c0_19] : memref<128x2xf32, #tpu.memory_space<vmem>>, vector<128x2xf32>
    tpu.vector_store %arg8[%c0_18, %c0_19], %31 {strides = array<i32>} : memref<128x2xf32, #tpu.memory_space<vmem>>, vector<128x2xf32>,
    return
  }
  func.func @transform_0(%arg0: i32) -> (i32, i32) {
    %c0_i32 = arith.constant 0 : i32
    %c0_i32_0 = arith.constant 0 : i32
    return %arg0, %c0_i32 : i32, i32
  }
  func.func @transform_1(%arg0: i32) -> (i32, i32) {
    %c0_i32 = arith.constant 0 : i32
    %c0_i32_0 = arith.constant 0 : i32
    %c0_i32_1 = arith.constant 0 : i32
    return %c0_i32, %c0_i32_0 : i32, i32
  }
  func.func @transform_2(%arg0: i32) -> (i32, i32) {
    %c0_i32 = arith.constant 0 : i32
    %c0_i32_0 = arith.constant 0 : i32
    %c0_i32_1 = arith.constant 0 : i32
    return %c0_i32, %c0_i32_0 : i32, i32
  }
  func.func @transform_3(%arg0: i32) -> (i32, i32) {
    %c0_i32 = arith.constant 0 : i32
    %c0_i32_0 = arith.constant 0 : i32
    %c0_i32_1 = arith.constant 0 : i32
    return %c0_i32, %c0_i32_0 : i32, i32
  }
  func.func @transform_4(%arg0: i32) -> (i32, i32) {
    %c0_i32 = arith.constant 0 : i32
    %c0_i32_0 = arith.constant 0 : i32
    %c0_i32_1 = arith.constant 0 : i32
    return %c0_i32, %c0_i32_0 : i32, i32
  }
  func.func @transform_5(%arg0: i32) -> (i32, i32) {
    %c0_i32 = arith.constant 0 : i32
    %c0_i32_0 = arith.constant 0 : i32
    %c0_i32_1 = arith.constant 0 : i32
    return %c0_i32, %c0_i32_0 : i32, i32
  }
  func.func @transform_6(%arg0: i32) -> (i32, i32) {
    %c0_i32 = arith.constant 0 : i32
    %c0_i32_0 = arith.constant 0 : i32
    %c0_i32_1 = arith.constant 0 : i32
    return %c0_i32, %c0_i32_0 : i32, i32
  }
  func.func @transform_7(%arg0: i32) -> (i32, i32) {
    %c0_i32 = arith.constant 0 : i32
    %c0_i32_0 = arith.constant 0 : i32
    return %arg0, %c0_i32 : i32, i32
  }
}

</mosaic_0001>

<llo_original>
// kernel: defense_nn_forward.1
$region0: #{defense_nn_forward.1}
  #allocation0 [shape = 'u32[]', space=smem, size = 0x4, offset = 0x4, fixed_abs, tag = 'smem constant byte address 0x4 - core index']
  #allocation1 [shape = 'u32[72,128]{1,0:T(1,128)}', space=vmem, size = 0x9000, scoped, tag = 'internal scratch']
  %s0 = inlined_call_operand.vmem [shape: f32[128,30], index: 0, kind: input, shape index: {}]
  %s1 = inlined_call_operand.vmem [shape: f32[64,30], index: 1, kind: input, shape index: {}]
  %s2 = inlined_call_operand.vmem [shape: f32[64,1], index: 2, kind: input, shape index: {}]
  %s3 = inlined_call_operand.vmem [shape: f32[32,64], index: 3, kind: input, shape index: {}]
  %s4 = inlined_call_operand.vmem [shape: f32[32,1], index: 4, kind: input, shape index: {}]
  %s5 = inlined_call_operand.vmem [shape: f32[2,32], index: 5, kind: input, shape index: {}]
  %s6 = inlined_call_operand.vmem [shape: f32[1,2], index: 6, kind: input, shape index: {}]
  %s7 = inlined_call_operand.vmem [shape: f32[128,2], index: 7, kind: output, shape index: {}]
  %s8 = sld [smem:[#allocation0]]
  $region38: #{defense_nn_forward.1} parent=0
    _
  %s10 = ssub.s32 1, %s8
  %s11 = scalar_select 0, %s10, %s8
  // Predicated region
  $region2: #{defense_nn_forward.1} parent=0 // pred_check
    _
  $region3: #{defense_nn_forward.1} parent=0 // pred_check_branch
    %13 = sbr.rel (0) target = $region5
  $region4: #{defense_nn_forward.1} parent=0 // pred_region
    _
  $region5: #{defense_nn_forward.1} parent=0 // pred_fallthru
    _
  // Predicated region
  $region6: #{defense_nn_forward.1} parent=0 // pred_check
    _
  $region7: #{defense_nn_forward.1} parent=0 // pred_check_branch
    %15 = sbr.rel (0) target = $region9
  $region8: #{defense_nn_forward.1} parent=0 // pred_region
    _
  $region9: #{defense_nn_forward.1} parent=0 // pred_fallthru
    _
  // Predicated region
  $region10: #{defense_nn_forward.1} parent=0 // pred_check
    _
  $region11: #{defense_nn_forward.1} parent=0 // pred_check_branch
    %17 = sbr.rel (0) target = $region13
  $region12: #{defense_nn_forward.1} parent=0 // pred_region
    _
  $region13: #{defense_nn_forward.1} parent=0 // pred_fallthru
    _
  // Predicated region
  $region14: #{defense_nn_forward.1} parent=0 // pred_check
    _
  $region15: #{defense_nn_forward.1} parent=0 // pred_check_branch
    %19 = sbr.rel (0) target = $region17
  $region16: #{defense_nn_forward.1} parent=0 // pred_region
    _
  $region17: #{defense_nn_forward.1} parent=0 // pred_fallthru
    _
  // Predicated region
  $region18: #{defense_nn_forward.1} parent=0 // pred_check
    _
  $region19: #{defense_nn_forward.1} parent=0 // pred_check_branch
    %21 = sbr.rel (0) target = $region21
  $region20: #{defense_nn_forward.1} parent=0 // pred_region
    _
  $region21: #{defense_nn_forward.1} parent=0 // pred_fallthru
    _
  // Predicated region
  $region22: #{defense_nn_forward.1} parent=0 // pred_check
    _
  $region23: #{defense_nn_forward.1} parent=0 // pred_check_branch
    %23 = sbr.rel (0) target = $region25
  $region24: #{defense_nn_forward.1} parent=0 // pred_region
    _
  $region25: #{defense_nn_forward.1} parent=0 // pred_fallthru
    _
  // Predicated region
  $region26: #{defense_nn_forward.1} parent=0 // pred_check
    _
  $region27: #{defense_nn_forward.1} parent=0 // pred_check_branch
    %25 = sbr.rel (0) target = $region29
  $region28: #{defense_nn_forward.1} parent=0 // pred_region
    _
  $region29: #{defense_nn_forward.1} parent=0 // pred_fallthru
    _
  %v26 = vld [vmem:[%s1] sm:$0xff]
  %v27 = vld [vmem:[%s1 + $0x8] sm:$0xff]
  %v28 = vld [vmem:[%s1 + $0x10] sm:$0xff]
  %v29 = vld [vmem:[%s1 + $0x18] sm:$0xff]
  %v30 = vld [vmem:[%s1 + $0x20] sm:$0xff]
  %v31 = vld [vmem:[%s1 + $0x28] sm:$0xff]
  %v32 = vld [vmem:[%s1 + $0x30] sm:$0xff]
  %v33 = vld [vmem:[%s1 + $0x38] sm:$0xff]
  %v34 = vld [vmem:[%s2] sm:$0xff]
  %v35 = vld [vmem:[%s2 + $0x8] sm:$0xff]
  %v36 = vld [vmem:[%s2 + $0x10] sm:$0xff]
  %v37 = vld [vmem:[%s2 + $0x18] sm:$0xff]
  %v38 = vld [vmem:[%s2 + $0x20] sm:$0xff]
  %v39 = vld [vmem:[%s2 + $0x28] sm:$0xff]
  %v40 = vld [vmem:[%s2 + $0x30] sm:$0xff]
  %v41 = vld [vmem:[%s2 + $0x38] sm:$0xff]
  %v42 = vld [vmem:[%s3] sm:$0xff]
  %v43 = vld [vmem:[%s3 + $0x8] sm:$0xff]
  %v44 = vld [vmem:[%s3 + $0x10] sm:$0xff]
  %v45 = vld [vmem:[%s3 + $0x18] sm:$0xff]
  %v46 = vld [vmem:[%s4] sm:$0xff]
  %v47 = vld [vmem:[%s4 + $0x8] sm:$0xff]
  %v48 = vld [vmem:[%s4 + $0x10] sm:$0xff]
  %v49 = vld [vmem:[%s4 + $0x18] sm:$0xff]
  %v50 = vld [vmem:[%s5] sm:$0x3]
  %v51 = vld [vmem:[%s6] sm:$0x1]
  %v52 = vld [vmem:[%s0] sm:$0xff]
  %v53 = vld [vmem:[%s0 + $0x8] sm:$0xff]
  %v54 = vld [vmem:[%s0 + $0x10] sm:$0xff]
  %v55 = vld [vmem:[%s0 + $0x18] sm:$0xff]
  %v56 = vld [vmem:[%s0 + $0x20] sm:$0xff]
  %v57 = vld [vmem:[%s0 + $0x28] sm:$0xff]
  %v58 = vld [vmem:[%s0 + $0x30] sm:$0xff]
  %v59 = vld [vmem:[%s0 + $0x38] sm:$0xff]
  %v60 = vld [vmem:[%s0 + $0x40] sm:$0xff]
  %v61 = vld [vmem:[%s0 + $0x48] sm:$0xff]
  %v62 = vld [vmem:[%s0 + $0x50] sm:$0xff]
  %v63 = vld [vmem:[%s0 + $0x58] sm:$0xff]
  %v64 = vld [vmem:[%s0 + $0x60] sm:$0xff]
  %v65 = vld [vmem:[%s0 + $0x68] sm:$0xff]
  %v66 = vld [vmem:[%s0 + $0x70] sm:$0xff]
  %v67 = vld [vmem:[%s0 + $0x78] sm:$0xff]
  %69 = vset.pattern.permute.xlu0 0
  %70 = vperm.xlu0 %69, %v34
  %v71 = vpop.permute.xlu0 %70
  %74 = vset.pattern.permute.xlu0 0
  %75 = vperm.xlu0 %74, %v35
  %v76 = vpop.permute.xlu0 %75
  %79 = vset.pattern.permute.xlu0 0
  %80 = vperm.xlu0 %79, %v36
  %v81 = vpop.permute.xlu0 %80
  %84 = vset.pattern.permute.xlu0 0
  %85 = vperm.xlu0 %84, %v37
  %v86 = vpop.permute.xlu0 %85
  %89 = vset.pattern.permute.xlu0 0
  %90 = vperm.xlu0 %89, %v38
  %v91 = vpop.permute.xlu0 %90
  %94 = vset.pattern.permute.xlu0 0
  %95 = vperm.xlu0 %94, %v39
  %v96 = vpop.permute.xlu0 %95
  %99 = vset.pattern.permute.xlu0 0
  %100 = vperm.xlu0 %99, %v40
  %v101 = vpop.permute.xlu0 %100
  %104 = vset.pattern.permute.xlu0 0
  %105 = vperm.xlu0 %104, %v41
  %v106 = vpop.permute.xlu0 %105
  %vm108 = vcmask 244736
  %v110 = vsel %vm108, %v26, 0
  %v113 = vsel %vm108, %v27, 0
  %v116 = vsel %vm108, %v28, 0
  %v119 = vsel %vm108, %v29, 0
  %v122 = vsel %vm108, %v30, 0
  %v125 = vsel %vm108, %v31, 0
  %v128 = vsel %vm108, %v32, 0
  %v131 = vsel %vm108, %v33, 0
  %v134 = vsel %vm108, %v52, 0
  %v137 = vsel %vm108, %v53, 0
  %v140 = vsel %vm108, %v54, 0
  %v143 = vsel %vm108, %v55, 0
  %v146 = vsel %vm108, %v56, 0
  %v149 = vsel %vm108, %v57, 0
  %v152 = vsel %vm108, %v58, 0
  %v155 = vsel %vm108, %v59, 0
  %v158 = vsel %vm108, %v60, 0
  %v161 = vsel %vm108, %v61, 0
  %v164 = vsel %vm108, %v62, 0
  %v167 = vsel %vm108, %v63, 0
  %v170 = vsel %vm108, %v64, 0
  %v173 = vsel %vm108, %v65, 0
  %v176 = vsel %vm108, %v66, 0
  %v179 = vsel %vm108, %v67, 0
  %v181 = vand.u32 %v179, 4294901760
  %182 = vmatpush.xpose.msra.mxu0 %v181
  %v183 = vand.u32 %v176, 4294901760
  %184 = vmatpush.xpose.msra.mxu0 %v183
  %v185 = vand.u32 %v173, 4294901760
  %186 = vmatpush.xpose.msra.mxu0 %v185
  %v187 = vand.u32 %v170, 4294901760
  %188 = vmatpush.xpose.msra.mxu0 %v187
  %v189 = vand.u32 %v167, 4294901760
  %190 = vmatpush.xpose.msra.mxu0 %v189
  %v191 = vand.u32 %v164, 4294901760
  %192 = vmatpush.xpose.msra.mxu0 %v191
  %v193 = vand.u32 %v161, 4294901760
  %194 = vmatpush.xpose.msra.mxu0 %v193
  %v195 = vand.u32 %v158, 4294901760
  %196 = vmatpush.xpose.msra.mxu0 %v195
  %v197 = vand.u32 %v155, 4294901760
  %198 = vmatpush.xpose.msra.mxu0 %v197
  %v199 = vand.u32 %v152, 4294901760
  %200 = vmatpush.xpose.msra.mxu0 %v199
  %v201 = vand.u32 %v149, 4294901760
  %202 = vmatpush.xpose.msra.mxu0 %v201
  %v203 = vand.u32 %v146, 4294901760
  %204 = vmatpush.xpose.msra.mxu0 %v203
  %v205 = vand.u32 %v143, 4294901760
  %206 = vmatpush.xpose.msra.mxu0 %v205
  %v207 = vand.u32 %v140, 4294901760
  %208 = vmatpush.xpose.msra.mxu0 %v207
  %v209 = vand.u32 %v137, 4294901760
  %210 = vmatpush.xpose.msra.mxu0 %v209
  %v211 = vand.u32 %v134, 4294901760
  %212 = vmatpush.xpose.msra.mxu0 %v211
  %v213 = vand.u32 %v110, 4294901760
  %v214 = vsub.f32 %v110, %v213
  %v215 = vand.u32 %v214, 4294901760
  %v216 = vsub.f32 %v214, %v215
  %v217 = vand.u32 %v216, 4294901760
  %218 = vmatmul.f32.gmra.mxu0 %v217
  %v219 = vpop.f32.mrf.mxu0
  %v220 = vadd.f32 %v71, %v219
  %v221 = vand.u32 %v113, 4294901760
  %v222 = vsub.f32 %v113, %v221
  %v223 = vand.u32 %v222, 4294901760
  %v224 = vsub.f32 %v222, %v223
  %v225 = vand.u32 %v224, 4294901760
  %226 = vmatmul.f32.gmra.mxu0 %v225
  %v227 = vpop.f32.mrf.mxu0
  %v228 = vadd.f32 %v76, %v227
  %v229 = vand.u32 %v116, 4294901760
  %v230 = vsub.f32 %v116, %v229
  %v231 = vand.u32 %v230, 4294901760
  %v232 = vsub.f32 %v230, %v231
  %v233 = vand.u32 %v232, 4294901760
  %234 = vmatmul.f32.gmra.mxu0 %v233
  %v235 = vpop.f32.mrf.mxu0
  %v236 = vadd.f32 %v81, %v235
  %v237 = vand.u32 %v119, 4294901760
  %v238 = vsub.f32 %v119, %v237
  %v239 = vand.u32 %v238, 4294901760
  %v240 = vsub.f32 %v238, %v239
  %v241 = vand.u32 %v240, 4294901760
  %242 = vmatmul.f32.gmra.mxu0 %v241
  %v243 = vpop.f32.mrf.mxu0
  %v244 = vadd.f32 %v86, %v243
  %v245 = vand.u32 %v122, 4294901760
  %v246 = vsub.f32 %v122, %v245
  %v247 = vand.u32 %v246, 4294901760
  %v248 = vsub.f32 %v246, %v247
  %v249 = vand.u32 %v248, 4294901760
  %250 = vmatmul.f32.gmra.mxu0 %v249
  %v251 = vpop.f32.mrf.mxu0
  %v252 = vadd.f32 %v91, %v251
  %v253 = vand.u32 %v125, 4294901760
  %v254 = vsub.f32 %v125, %v253
  %v255 = vand.u32 %v254, 4294901760
  %v256 = vsub.f32 %v254, %v255
  %v257 = vand.u32 %v256, 4294901760
  %258 = vmatmul.f32.gmra.mxu0 %v257
  %v259 = vpop.f32.mrf.mxu0
  %v260 = vadd.f32 %v96, %v259
  %v261 = vand.u32 %v128, 4294901760
  %v262 = vsub.f32 %v128, %v261
  %v263 = vand.u32 %v262, 4294901760
  %v264 = vsub.f32 %v262, %v263
  %v265 = vand.u32 %v264, 4294901760
  %266 = vmatmul.f32.gmra.mxu0 %v265
  %v267 = vpop.f32.mrf.mxu0
  %v268 = vadd.f32 %v101, %v267
  %v269 = vand.u32 %v131, 4294901760
  %v270 = vsub.f32 %v131, %v269
  %v271 = vand.u32 %v270, 4294901760
  %v272 = vsub.f32 %v270, %v271
  %v273 = vand.u32 %v272, 4294901760
  %274 = vmatmul.f32.gmra.mxu0 %v273
  %v275 = vpop.f32.mrf.mxu0
  %v276 = vadd.f32 %v106, %v275
  %277 = vdwg.mxu0
  %v278 = vand.u32 %v179, 4294901760
  %v279 = vsub.f32 %v179, %v278
  %v280 = vand.u32 %v279, 4294901760
  %v281 = vsub.f32 %v279, %v280
  %v282 = vand.u32 %v281, 4294901760
  %283 = vmatpush.xpose.msra.mxu0 %v282
  %v284 = vand.u32 %v176, 4294901760
  %v285 = vsub.f32 %v176, %v284
  %v286 = vand.u32 %v285, 4294901760
  %v287 = vsub.f32 %v285, %v286
  %v288 = vand.u32 %v287, 4294901760
  %289 = vmatpush.xpose.msra.mxu0 %v288
  %v290 = vand.u32 %v173, 4294901760
  %v291 = vsub.f32 %v173, %v290
  %v292 = vand.u32 %v291, 4294901760
  %v293 = vsub.f32 %v291, %v292
  %v294 = vand.u32 %v293, 4294901760
  %295 = vmatpush.xpose.msra.mxu0 %v294
  %v296 = vand.u32 %v170, 4294901760
  %v297 = vsub.f32 %v170, %v296
  %v298 = vand.u32 %v297, 4294901760
  %v299 = vsub.f32 %v297, %v298
  %v300 = vand.u32 %v299, 4294901760
  %301 = vmatpush.xpose.msra.mxu0 %v300
  %v302 = vand.u32 %v167, 4294901760
  %v303 = vsub.f32 %v167, %v302
  %v304 = vand.u32 %v303, 4294901760
  %v305 = vsub.f32 %v303, %v304
  %v306 = vand.u32 %v305, 4294901760
  %307 = vmatpush.xpose.msra.mxu0 %v306
  %v308 = vand.u32 %v164, 4294901760
  %v309 = vsub.f32 %v164, %v308
  %v310 = vand.u32 %v309, 4294901760
  %v311 = vsub.f32 %v309, %v310
  %v312 = vand.u32 %v311, 4294901760
  %313 = vmatpush.xpose.msra.mxu0 %v312
  %v314 = vand.u32 %v161, 4294901760
  %v315 = vsub.f32 %v161, %v314
  %v316 = vand.u32 %v315, 4294901760
  %v317 = vsub.f32 %v315, %v316
  %v318 = vand.u32 %v317, 4294901760
  %319 = vmatpush.xpose.msra.mxu0 %v318
  %v320 = vand.u32 %v158, 4294901760
  %v321 = vsub.f32 %v158, %v320
  %v322 = vand.u32 %v321, 4294901760
  %v323 = vsub.f32 %v321, %v322
  %v324 = vand.u32 %v323, 4294901760
  %325 = vmatpush.xpose.msra.mxu0 %v324
  %v326 = vand.u32 %v155, 4294901760
  %v327 = vsub.f32 %v155, %v326
  %v328 = vand.u32 %v327, 4294901760
  %v329 = vsub.f32 %v327, %v328
  %v330 = vand.u32 %v329, 4294901760
  %331 = vmatpush.xpose.msra.mxu0 %v330
  %v332 = vand.u32 %v152, 4294901760
  %v333 = vsub.f32 %v152, %v332
  %v334 = vand.u32 %v333, 4294901760
  %v335 = vsub.f32 %v333, %v334
  %v336 = vand.u32 %v335, 4294901760
  %337 = vmatpush.xpose.msra.mxu0 %v336
  %v338 = vand.u32 %v149, 4294901760
  %v339 = vsub.f32 %v149, %v338
  %v340 = vand.u32 %v339, 4294901760
  %v341 = vsub.f32 %v339, %v340
  %v342 = vand.u32 %v341, 4294901760
  %343 = vmatpush.xpose.msra.mxu0 %v342
  %v344 = vand.u32 %v146, 4294901760
  %v345 = vsub.f32 %v146, %v344
  %v346 = vand.u32 %v345, 4294901760
  %v347 = vsub.f32 %v345, %v346
  %v348 = vand.u32 %v347, 4294901760
  %349 = vmatpush.xpose.msra.mxu0 %v348
  %v350 = vand.u32 %v143, 4294901760
  %v351 = vsub.f32 %v143, %v350
  %v352 = vand.u32 %v351, 4294901760
  %v353 = vsub.f32 %v351, %v352
  %v354 = vand.u32 %v353, 4294901760
  %355 = vmatpush.xpose.msra.mxu0 %v354
  %v356 = vand.u32 %v140, 4294901760
  %v357 = vsub.f32 %v140, %v356
  %v358 = vand.u32 %v357, 4294901760
  %v359 = vsub.f32 %v357, %v358
  %v360 = vand.u32 %v359, 4294901760
  %361 = vmatpush.xpose.msra.mxu0 %v360
  %v362 = vand.u32 %v137, 4294901760
  %v363 = vsub.f32 %v137, %v362
  %v364 = vand.u32 %v363, 4294901760
  %v365 = vsub.f32 %v363, %v364
  %v366 = vand.u32 %v365, 4294901760
  %367 = vmatpush.xpose.msra.mxu0 %v366
  %v368 = vand.u32 %v134, 4294901760
  %v369 = vsub.f32 %v134, %v368
  %v370 = vand.u32 %v369, 4294901760
  %v371 = vsub.f32 %v369, %v370
  %v372 = vand.u32 %v371, 4294901760
  %373 = vmatpush.xpose.msra.mxu0 %v372
  %v374 = vand.u32 %v110, 4294901760
  %375 = vmatmul.f32.gmra.mxu0 %v374
  %v376 = vpop.f32.mrf.mxu0
  %v377 = vadd.f32 %v220, %v376
  %v378 = vand.u32 %v113, 4294901760
  %379 = vmatmul.f32.gmra.mxu0 %v378
  %v380 = vpop.f32.mrf.mxu0
  %v381 = vadd.f32 %v228, %v380
  %v382 = vand.u32 %v116, 4294901760
  %383 = vmatmul.f32.gmra.mxu0 %v382
  %v384 = vpop.f32.mrf.mxu0
  %v385 = vadd.f32 %v236, %v384
  %v386 = vand.u32 %v119, 4294901760
  %387 = vmatmul.f32.gmra.mxu0 %v386
  %v388 = vpop.f32.mrf.mxu0
  %v389 = vadd.f32 %v244, %v388
  %v390 = vand.u32 %v122, 4294901760
  %391 = vmatmul.f32.gmra.mxu0 %v390
  %v392 = vpop.f32.mrf.mxu0
  %v393 = vadd.f32 %v252, %v392
  %v394 = vand.u32 %v125, 4294901760
  %395 = vmatmul.f32.gmra.mxu0 %v394
  %v396 = vpop.f32.mrf.mxu0
  %v397 = vadd.f32 %v260, %v396
  %v398 = vand.u32 %v128, 4294901760
  %399 = vmatmul.f32.gmra.mxu0 %v398
  %v400 = vpop.f32.mrf.mxu0
  %v401 = vadd.f32 %v268, %v400
  %v402 = vand.u32 %v131, 4294901760
  %403 = vmatmul.f32.gmra.mxu0 %v402
  %v404 = vpop.f32.mrf.mxu0
  %v405 = vadd.f32 %v276, %v404
  %406 = vdwg.mxu0
  %v407 = vand.u32 %v179, 4294901760
  %v408 = vsub.f32 %v179, %v407
  %409 = vmatpush.xpose.msra.mxu0 %v408
  %v410 = vand.u32 %v176, 4294901760
  %v411 = vsub.f32 %v176, %v410
  %412 = vmatpush.xpose.msra.mxu0 %v411
  %v413 = vand.u32 %v173, 4294901760
  %v414 = vsub.f32 %v173, %v413
  %415 = vmatpush.xpose.msra.mxu0 %v414
  %v416 = vand.u32 %v170, 4294901760
  %v417 = vsub.f32 %v170, %v416
  %418 = vmatpush.xpose.msra.mxu0 %v417
  %v419 = vand.u32 %v167, 4294901760
  %v420 = vsub.f32 %v167, %v419
  %421 = vmatpush.xpose.msra.mxu0 %v420
  %v422 = vand.u32 %v164, 4294901760
  %v423 = vsub.f32 %v164, %v422
  %424 = vmatpush.xpose.msra.mxu0 %v423
  %v425 = vand.u32 %v161, 4294901760
  %v426 = vsub.f32 %v161, %v425
  %427 = vmatpush.xpose.msra.mxu0 %v426
  %v428 = vand.u32 %v158, 4294901760
  %v429 = vsub.f32 %v158, %v428
  %430 = vmatpush.xpose.msra.mxu0 %v429
  %v431 = vand.u32 %v155, 4294901760
  %v432 = vsub.f32 %v155, %v431
  %433 = vmatpush.xpose.msra.mxu0 %v432
  %v434 = vand.u32 %v152, 4294901760
  %v435 = vsub.f32 %v152, %v434
  %436 = vmatpush.xpose.msra.mxu0 %v435
  %v437 = vand.u32 %v149, 4294901760
  %v438 = vsub.f32 %v149, %v437
  %439 = vmatpush.xpose.msra.mxu0 %v438
  %v440 = vand.u32 %v146, 4294901760
  %v441 = vsub.f32 %v146, %v440
  %442 = vmatpush.xpose.msra.mxu0 %v441
  %v443 = vand.u32 %v143, 4294901760
  %v444 = vsub.f32 %v143, %v443
  %445 = vmatpush.xpose.msra.mxu0 %v444
  %v446 = vand.u32 %v140, 4294901760
  %v447 = vsub.f32 %v140, %v446
  %448 = vmatpush.xpose.msra.mxu0 %v447
  %v449 = vand.u32 %v137, 4294901760
  %v450 = vsub.f32 %v137, %v449
  %451 = vmatpush.xpose.msra.mxu0 %v450
  %v452 = vand.u32 %v134, 4294901760
  %v453 = vsub.f32 %v134, %v452
  %454 = vmatpush.xpose.msra.mxu0 %v453
  %v455 = vand.u32 %v110, 4294901760
  %v456 = vsub.f32 %v110, %v455
  %457 = vmatmul.f32.gmra.mxu0 %v456
  %v458 = vpop.f32.mrf.mxu0
  %v459 = vadd.f32 %v377, %v458
  %v460 = vand.u32 %v113, 4294901760
  %v461 = vsub.f32 %v113, %v460
  %462 = vmatmul.f32.gmra.mxu0 %v461
  %v463 = vpop.f32.mrf.mxu0
  %v464 = vadd.f32 %v381, %v463
  %v465 = vand.u32 %v116, 4294901760
  %v466 = vsub.f32 %v116, %v465
  %467 = vmatmul.f32.gmra.mxu0 %v466
  %v468 = vpop.f32.mrf.mxu0
  %v469 = vadd.f32 %v385, %v468
  %v470 = vand.u32 %v119, 4294901760
  %v471 = vsub.f32 %v119, %v470
  %472 = vmatmul.f32.gmra.mxu0 %v471
  %v473 = vpop.f32.mrf.mxu0
  %v474 = vadd.f32 %v389, %v473
  %v475 = vand.u32 %v122, 4294901760
  %v476 = vsub.f32 %v122, %v475
  %477 = vmatmul.f32.gmra.mxu0 %v476
  %v478 = vpop.f32.mrf.mxu0
  %v479 = vadd.f32 %v393, %v478
  %v480 = vand.u32 %v125, 4294901760
  %v481 = vsub.f32 %v125, %v480
  %482 = vmatmul.f32.gmra.mxu0 %v481
  %v483 = vpop.f32.mrf.mxu0
  %v484 = vadd.f32 %v397, %v483
  %v485 = vand.u32 %v128, 4294901760
  %v486 = vsub.f32 %v128, %v485
  %487 = vmatmul.f32.gmra.mxu0 %v486
  %v488 = vpop.f32.mrf.mxu0
  %v489 = vadd.f32 %v401, %v488
  %v490 = vand.u32 %v131, 4294901760
  %v491 = vsub.f32 %v131, %v490
  %492 = vmatmul.f32.gmra.mxu0 %v491
  %v493 = vpop.f32.mrf.mxu0
  %v494 = vadd.f32 %v405, %v493
  %495 = vdwg.mxu0
  %v496 = vand.u32 %v179, 4294901760
  %497 = vmatpush.xpose.msra.mxu0 %v496
  %v498 = vand.u32 %v176, 4294901760
  %499 = vmatpush.xpose.msra.mxu0 %v498
  %v500 = vand.u32 %v173, 4294901760
  %501 = vmatpush.xpose.msra.mxu0 %v500
  %v502 = vand.u32 %v170, 4294901760
  %503 = vmatpush.xpose.msra.mxu0 %v502
  %v504 = vand.u32 %v167, 4294901760
  %505 = vmatpush.xpose.msra.mxu0 %v504
  %v506 = vand.u32 %v164, 4294901760
  %507 = vmatpush.xpose.msra.mxu0 %v506
  %v508 = vand.u32 %v161, 4294901760
  %509 = vmatpush.xpose.msra.mxu0 %v508
  %v510 = vand.u32 %v158, 4294901760
  %511 = vmatpush.xpose.msra.mxu0 %v510
  %v512 = vand.u32 %v155, 4294901760
  %513 = vmatpush.xpose.msra.mxu0 %v512
  %v514 = vand.u32 %v152, 4294901760
  %515 = vmatpush.xpose.msra.mxu0 %v514
  %v516 = vand.u32 %v149, 4294901760
  %517 = vmatpush.xpose.msra.mxu0 %v516
  %v518 = vand.u32 %v146, 4294901760
  %519 = vmatpush.xpose.msra.mxu0 %v518
  %v520 = vand.u32 %v143, 4294901760
  %521 = vmatpush.xpose.msra.mxu0 %v520
  %v522 = vand.u32 %v140, 4294901760
  %523 = vmatpush.xpose.msra.mxu0 %v522
  %v524 = vand.u32 %v137, 4294901760
  %525 = vmatpush.xpose.msra.mxu0 %v524
  %v526 = vand.u32 %v134, 4294901760
  %527 = vmatpush.xpose.msra.mxu0 %v526
  %v528 = vand.u32 %v110, 4294901760
  %v529 = vsub.f32 %v110, %v528
  %v530 = vand.u32 %v529, 4294901760
  %531 = vmatmul.f32.gmra.mxu0 %v530
  %v532 = vpop.f32.mrf.mxu0
  %v533 = vadd.f32 %v459, %v532
  %v534 = vand.u32 %v113, 4294901760
  %v535 = vsub.f32 %v113, %v534
  %v536 = vand.u32 %v535, 4294901760
  %537 = vmatmul.f32.gmra.mxu0 %v536
  %v538 = vpop.f32.mrf.mxu0
  %v539 = vadd.f32 %v464, %v538
  %v540 = vand.u32 %v116, 4294901760
  %v541 = vsub.f32 %v116, %v540
  %v542 = vand.u32 %v541, 4294901760
  %543 = vmatmul.f32.gmra.mxu0 %v542
  %v544 = vpop.f32.mrf.mxu0
  %v545 = vadd.f32 %v469, %v544
  %v546 = vand.u32 %v119, 4294901760
  %v547 = vsub.f32 %v119, %v546
  %v548 = vand.u32 %v547, 4294901760
  %549 = vmatmul.f32.gmra.mxu0 %v548
  %v550 = vpop.f32.mrf.mxu0
  %v551 = vadd.f32 %v474, %v550
  %v552 = vand.u32 %v122, 4294901760
  %v553 = vsub.f32 %v122, %v552
  %v554 = vand.u32 %v553, 4294901760
  %555 = vmatmul.f32.gmra.mxu0 %v554
  %v556 = vpop.f32.mrf.mxu0
  %v557 = vadd.f32 %v479, %v556
  %v558 = vand.u32 %v125, 4294901760
  %v559 = vsub.f32 %v125, %v558
  %v560 = vand.u32 %v559, 4294901760
  %561 = vmatmul.f32.gmra.mxu0 %v560
  %v562 = vpop.f32.mrf.mxu0
  %v563 = vadd.f32 %v484, %v562
  %v564 = vand.u32 %v128, 4294901760
  %v565 = vsub.f32 %v128, %v564
  %v566 = vand.u32 %v565, 4294901760
  %567 = vmatmul.f32.gmra.mxu0 %v566
  %v568 = vpop.f32.mrf.mxu0
  %v569 = vadd.f32 %v489, %v568
  %v570 = vand.u32 %v131, 4294901760
  %v571 = vsub.f32 %v131, %v570
  %v572 = vand.u32 %v571, 4294901760
  %573 = vmatmul.f32.gmra.mxu0 %v572
  %v574 = vpop.f32.mrf.mxu0
  %v575 = vadd.f32 %v494, %v574
  %576 = vdwg.mxu0
  %v577 = vand.u32 %v179, 4294901760
  %v578 = vsub.f32 %v179, %v577
  %v579 = vand.u32 %v578, 4294901760
  %580 = vmatpush.xpose.msra.mxu0 %v579
  %v581 = vand.u32 %v176, 4294901760
  %v582 = vsub.f32 %v176, %v581
  %v583 = vand.u32 %v582, 4294901760
  %584 = vmatpush.xpose.msra.mxu0 %v583
  %v585 = vand.u32 %v173, 4294901760
  %v586 = vsub.f32 %v173, %v585
  %v587 = vand.u32 %v586, 4294901760
  %588 = vmatpush.xpose.msra.mxu0 %v587
  %v589 = vand.u32 %v170, 4294901760
  %v590 = vsub.f32 %v170, %v589
  %v591 = vand.u32 %v590, 4294901760
  %592 = vmatpush.xpose.msra.mxu0 %v591
  %v593 = vand.u32 %v167, 4294901760
  %v594 = vsub.f32 %v167, %v593
  %v595 = vand.u32 %v594, 4294901760
  %596 = vmatpush.xpose.msra.mxu0 %v595
  %v597 = vand.u32 %v164, 4294901760
  %v598 = vsub.f32 %v164, %v597
  %v599 = vand.u32 %v598, 4294901760
  %600 = vmatpush.xpose.msra.mxu0 %v599
  %v601 = vand.u32 %v161, 4294901760
  %v602 = vsub.f32 %v161, %v601
  %v603 = vand.u32 %v602, 4294901760
  %604 = vmatpush.xpose.msra.mxu0 %v603
  %v605 = vand.u32 %v158, 4294901760
  %v606 = vsub.f32 %v158, %v605
  %v607 = vand.u32 %v606, 4294901760
  %608 = vmatpush.xpose.msra.mxu0 %v607
  %v609 = vand.u32 %v155, 4294901760
  %v610 = vsub.f32 %v155, %v609
  %v611 = vand.u32 %v610, 4294901760
  %612 = vmatpush.xpose.msra.mxu0 %v611
  %v613 = vand.u32 %v152, 4294901760
  %v614 = vsub.f32 %v152, %v613
  %v615 = vand.u32 %v614, 4294901760
  %616 = vmatpush.xpose.msra.mxu0 %v615
  %v617 = vand.u32 %v149, 4294901760
  %v618 = vsub.f32 %v149, %v617
  %v619 = vand.u32 %v618, 4294901760
  %620 = vmatpush.xpose.msra.mxu0 %v619
  %v621 = vand.u32 %v146, 4294901760
  %v622 = vsub.f32 %v146, %v621
  %v623 = vand.u32 %v622, 4294901760
  %624 = vmatpush.xpose.msra.mxu0 %v623
  %v625 = vand.u32 %v143, 4294901760
  %v626 = vsub.f32 %v143, %v625
  %v627 = vand.u32 %v626, 4294901760
  %628 = vmatpush.xpose.msra.mxu0 %v627
  %v629 = vand.u32 %v140, 4294901760
  %v630 = vsub.f32 %v140, %v629
  %v631 = vand.u32 %v630, 4294901760
  %632 = vmatpush.xpose.msra.mxu0 %v631
  %v633 = vand.u32 %v137, 4294901760
  %v634 = vsub.f32 %v137, %v633
  %v635 = vand.u32 %v634, 4294901760
  %636 = vmatpush.xpose.msra.mxu0 %v635
  %v637 = vand.u32 %v134, 4294901760
  %v638 = vsub.f32 %v134, %v637
  %v639 = vand.u32 %v638, 4294901760
  %640 = vmatpush.xpose.msra.mxu0 %v639
  %v641 = vand.u32 %v110, 4294901760
  %642 = vmatmul.f32.gmra.mxu0 %v641
  %v643 = vpop.f32.mrf.mxu0
  %v644 = vadd.f32 %v533, %v643
  %v645 = vand.u32 %v113, 4294901760
  %646 = vmatmul.f32.gmra.mxu0 %v645
  %v647 = vpop.f32.mrf.mxu0
  %v648 = vadd.f32 %v539, %v647
  %v649 = vand.u32 %v116, 4294901760
  %650 = vmatmul.f32.gmra.mxu0 %v649
  %v651 = vpop.f32.mrf.mxu0
  %v652 = vadd.f32 %v545, %v651
  %v653 = vand.u32 %v119, 4294901760
  %654 = vmatmul.f32.gmra.mxu0 %v653
  %v655 = vpop.f32.mrf.mxu0
  %v656 = vadd.f32 %v551, %v655
  %v657 = vand.u32 %v122, 4294901760
  %658 = vmatmul.f32.gmra.mxu0 %v657
  %v659 = vpop.f32.mrf.mxu0
  %v660 = vadd.f32 %v557, %v659
  %v661 = vand.u32 %v125, 4294901760
  %662 = vmatmul.f32.gmra.mxu0 %v661
  %v663 = vpop.f32.mrf.mxu0
  %v664 = vadd.f32 %v563, %v663
  %v665 = vand.u32 %v128, 4294901760
  %666 = vmatmul.f32.gmra.mxu0 %v665
  %v667 = vpop.f32.mrf.mxu0
  %v668 = vadd.f32 %v569, %v667
  %v669 = vand.u32 %v131, 4294901760
  %670 = vmatmul.f32.gmra.mxu0 %v669
  %v671 = vpop.f32.mrf.mxu0
  %v672 = vadd.f32 %v575, %v671
  %673 = vdwg.mxu0
  %v674 = vand.u32 %v179, 4294901760
  %675 = vmatpush.xpose.msra.mxu0 %v674
  %v676 = vand.u32 %v176, 4294901760
  %677 = vmatpush.xpose.msra.mxu0 %v676
  %v678 = vand.u32 %v173, 4294901760
  %679 = vmatpush.xpose.msra.mxu0 %v678
  %v680 = vand.u32 %v170, 4294901760
  %681 = vmatpush.xpose.msra.mxu0 %v680
  %v682 = vand.u32 %v167, 4294901760
  %683 = vmatpush.xpose.msra.mxu0 %v682
  %v684 = vand.u32 %v164, 4294901760
  %685 = vmatpush.xpose.msra.mxu0 %v684
  %v686 = vand.u32 %v161, 4294901760
  %687 = vmatpush.xpose.msra.mxu0 %v686
  %v688 = vand.u32 %v158, 4294901760
  %689 = vmatpush.xpose.msra.mxu0 %v688
  %v690 = vand.u32 %v155, 4294901760
  %691 = vmatpush.xpose.msra.mxu0 %v690
  %v692 = vand.u32 %v152, 4294901760
  %693 = vmatpush.xpose.msra.mxu0 %v692
  %v694 = vand.u32 %v149, 4294901760
  %695 = vmatpush.xpose.msra.mxu0 %v694
  %v696 = vand.u32 %v146, 4294901760
  %697 = vmatpush.xpose.msra.mxu0 %v696
  %v698 = vand.u32 %v143, 4294901760
  %699 = vmatpush.xpose.msra.mxu0 %v698
  %v700 = vand.u32 %v140, 4294901760
  %701 = vmatpush.xpose.msra.mxu0 %v700
  %v702 = vand.u32 %v137, 4294901760
  %703 = vmatpush.xpose.msra.mxu0 %v702
  %v704 = vand.u32 %v134, 4294901760
  %705 = vmatpush.xpose.msra.mxu0 %v704
  %v706 = vand.u32 %v110, 4294901760
  %707 = vmatmul.f32.gmra.mxu0 %v706
  %v708 = vpop.f32.mrf.mxu0
  %v709 = vadd.f32 %v644, %v708
  %v710 = vand.u32 %v113, 4294901760
  %711 = vmatmul.f32.gmra.mxu0 %v710
  %v712 = vpop.f32.mrf.mxu0
  %v713 = vadd.f32 %v648, %v712
  %v714 = vand.u32 %v116, 4294901760
  %715 = vmatmul.f32.gmra.mxu0 %v714
  %v716 = vpop.f32.mrf.mxu0
  %v717 = vadd.f32 %v652, %v716
  %v718 = vand.u32 %v119, 4294901760
  %719 = vmatmul.f32.gmra.mxu0 %v718
  %v720 = vpop.f32.mrf.mxu0
  %v721 = vadd.f32 %v656, %v720
  %v722 = vand.u32 %v122, 4294901760
  %723 = vmatmul.f32.gmra.mxu0 %v722
  %v724 = vpop.f32.mrf.mxu0
  %v725 = vadd.f32 %v660, %v724
  %v726 = vand.u32 %v125, 4294901760
  %727 = vmatmul.f32.gmra.mxu0 %v726
  %v728 = vpop.f32.mrf.mxu0
  %v729 = vadd.f32 %v664, %v728
  %v730 = vand.u32 %v128, 4294901760
  %731 = vmatmul.f32.gmra.mxu0 %v730
  %v732 = vpop.f32.mrf.mxu0
  %v733 = vadd.f32 %v668, %v732
  %v734 = vand.u32 %v131, 4294901760
  %735 = vmatmul.f32.gmra.mxu0 %v734
  %v736 = vpop.f32.mrf.mxu0
  %v737 = vadd.f32 %v672, %v736
  %738 = vdwg.mxu0
  %v739 = vmax.f32 %v709, 0.0
  %v740 = vmax.f32 %v713, 0.0
  %v741 = vmax.f32 %v717, 0.0
  %v742 = vmax.f32 %v721, 0.0
  %v743 = vmax.f32 %v725, 0.0
  %v744 = vmax.f32 %v729, 0.0
  %v745 = vmax.f32 %v733, 0.0
  %v746 = vmax.f32 %v737, 0.0
  %748 = vset.pattern.permute.xlu0 0
  %749 = vperm.xlu0 %748, %v46
  %v750 = vpop.permute.xlu0 %749
  %753 = vset.pattern.permute.xlu0 0
  %754 = vperm.xlu0 %753, %v47
  %v755 = vpop.permute.xlu0 %754
  %758 = vset.pattern.permute.xlu0 0
  %759 = vperm.xlu0 %758, %v48
  %v760 = vpop.permute.xlu0 %759
  %763 = vset.pattern.permute.xlu0 0
  %764 = vperm.xlu0 %763, %v49
  %v765 = vpop.permute.xlu0 %764
  %vm767 = vcmask 523264
  %v769 = vsel %vm767, %v42, 0
  %v772 = vsel %vm767, %v43, 0
  %v775 = vsel %vm767, %v44, 0
  %v778 = vsel %vm767, %v45, 0
  %780 = vmatpush.msra.mxu0 0.0
  %781 = vmatpush.msra.mxu0 0.0
  %782 = vmatpush.msra.mxu0 0.0
  %783 = vmatpush.msra.mxu0 0.0
  %784 = vmatpush.msra.mxu0 0.0
  %785 = vmatpush.msra.mxu0 0.0
  %786 = vmatpush.msra.mxu0 0.0
  %787 = vmatpush.msra.mxu0 0.0
  %v788 = vand.u32 %v746, 4294901760
  %789 = vmatpush.msra.mxu0 %v788
  %v790 = vand.u32 %v745, 4294901760
  %791 = vmatpush.msra.mxu0 %v790
  %v792 = vand.u32 %v744, 4294901760
  %793 = vmatpush.msra.mxu0 %v792
  %v794 = vand.u32 %v743, 4294901760
  %795 = vmatpush.msra.mxu0 %v794
  %v796 = vand.u32 %v742, 4294901760
  %797 = vmatpush.msra.mxu0 %v796
  %v798 = vand.u32 %v741, 4294901760
  %799 = vmatpush.msra.mxu0 %v798
  %v800 = vand.u32 %v740, 4294901760
  %801 = vmatpush.msra.mxu0 %v800
  %v802 = vand.u32 %v739, 4294901760
  %803 = vmatpush.msra.mxu0 %v802
  %v804 = vand.u32 %v769, 4294901760
  %v805 = vsub.f32 %v769, %v804
  %v806 = vand.u32 %v805, 4294901760
  %v807 = vsub.f32 %v805, %v806
  %v808 = vand.u32 %v807, 4294901760
  %809 = vmatmul.f32.gmra.mxu0 %v808
  %v810 = vpop.f32.mrf.mxu0
  %v811 = vadd.f32 %v750, %v810
  %v812 = vand.u32 %v772, 4294901760
  %v813 = vsub.f32 %v772, %v812
  %v814 = vand.u32 %v813, 4294901760
  %v815 = vsub.f32 %v813, %v814
  %v816 = vand.u32 %v815, 4294901760
  %817 = vmatmul.f32.gmra.mxu0 %v816
  %v818 = vpop.f32.mrf.mxu0
  %v819 = vadd.f32 %v755, %v818
  %v820 = vand.u32 %v775, 4294901760
  %v821 = vsub.f32 %v775, %v820
  %v822 = vand.u32 %v821, 4294901760
  %v823 = vsub.f32 %v821, %v822
  %v824 = vand.u32 %v823, 4294901760
  %825 = vmatmul.f32.gmra.mxu0 %v824
  %v826 = vpop.f32.mrf.mxu0
  %v827 = vadd.f32 %v760, %v826
  %v828 = vand.u32 %v778, 4294901760
  %v829 = vsub.f32 %v778, %v828
  %v830 = vand.u32 %v829, 4294901760
  %v831 = vsub.f32 %v829, %v830
  %v832 = vand.u32 %v831, 4294901760
  %833 = vmatmul.f32.gmra.mxu0 %v832
  %v834 = vpop.f32.mrf.mxu0
  %v835 = vadd.f32 %v765, %v834
  %836 = vdwg.mxu0
  %837 = vmatpush.msra.mxu0 0.0
  %838 = vmatpush.msra.mxu0 0.0
  %839 = vmatpush.msra.mxu0 0.0
  %840 = vmatpush.msra.mxu0 0.0
  %841 = vmatpush.msra.mxu0 0.0
  %842 = vmatpush.msra.mxu0 0.0
  %843 = vmatpush.msra.mxu0 0.0
  %844 = vmatpush.msra.mxu0 0.0
  %v845 = vand.u32 %v746, 4294901760
  %v846 = vsub.f32 %v746, %v845
  %v847 = vand.u32 %v846, 4294901760
  %v848 = vsub.f32 %v846, %v847
  %v849 = vand.u32 %v848, 4294901760
  %850 = vmatpush.msra.mxu0 %v849
  %v851 = vand.u32 %v745, 4294901760
  %v852 = vsub.f32 %v745, %v851
  %v853 = vand.u32 %v852, 4294901760
  %v854 = vsub.f32 %v852, %v853
  %v855 = vand.u32 %v854, 4294901760
  %856 = vmatpush.msra.mxu0 %v855
  %v857 = vand.u32 %v744, 4294901760
  %v858 = vsub.f32 %v744, %v857
  %v859 = vand.u32 %v858, 4294901760
  %v860 = vsub.f32 %v858, %v859
  %v861 = vand.u32 %v860, 4294901760
  %862 = vmatpush.msra.mxu0 %v861
  %v863 = vand.u32 %v743, 4294901760
  %v864 = vsub.f32 %v743, %v863
  %v865 = vand.u32 %v864, 4294901760
  %v866 = vsub.f32 %v864, %v865
  %v867 = vand.u32 %v866, 4294901760
  %868 = vmatpush.msra.mxu0 %v867
  %v869 = vand.u32 %v742, 4294901760
  %v870 = vsub.f32 %v742, %v869
  %v871 = vand.u32 %v870, 4294901760
  %v872 = vsub.f32 %v870, %v871
  %v873 = vand.u32 %v872, 4294901760
  %874 = vmatpush.msra.mxu0 %v873
  %v875 = vand.u32 %v741, 4294901760
  %v876 = vsub.f32 %v741, %v875
  %v877 = vand.u32 %v876, 4294901760
  %v878 = vsub.f32 %v876, %v877
  %v879 = vand.u32 %v878, 4294901760
  %880 = vmatpush.msra.mxu0 %v879
  %v881 = vand.u32 %v740, 4294901760
  %v882 = vsub.f32 %v740, %v881
  %v883 = vand.u32 %v882, 4294901760
  %v884 = vsub.f32 %v882, %v883
  %v885 = vand.u32 %v884, 4294901760
  %886 = vmatpush.msra.mxu0 %v885
  %v887 = vand.u32 %v739, 4294901760
  %v888 = vsub.f32 %v739, %v887
  %v889 = vand.u32 %v888, 4294901760
  %v890 = vsub.f32 %v888, %v889
  %v891 = vand.u32 %v890, 4294901760
  %892 = vmatpush.msra.mxu0 %v891
  %v893 = vand.u32 %v769, 4294901760
  %894 = vmatmul.f32.gmra.mxu0 %v893
  %v895 = vpop.f32.mrf.mxu0
  %v896 = vadd.f32 %v811, %v895
  %v897 = vand.u32 %v772, 4294901760
  %898 = vmatmul.f32.gmra.mxu0 %v897
  %v899 = vpop.f32.mrf.mxu0
  %v900 = vadd.f32 %v819, %v899
  %v901 = vand.u32 %v775, 4294901760
  %902 = vmatmul.f32.gmra.mxu0 %v901
  %v903 = vpop.f32.mrf.mxu0
  %v904 = vadd.f32 %v827, %v903
  %v905 = vand.u32 %v778, 4294901760
  %906 = vmatmul.f32.gmra.mxu0 %v905
  %v907 = vpop.f32.mrf.mxu0
  %v908 = vadd.f32 %v835, %v907
  %909 = vdwg.mxu0
  %910 = vmatpush.msra.mxu0 0.0
  %911 = vmatpush.msra.mxu0 0.0
  %912 = vmatpush.msra.mxu0 0.0
  %913 = vmatpush.msra.mxu0 0.0
  %914 = vmatpush.msra.mxu0 0.0
  %915 = vmatpush.msra.mxu0 0.0
  %916 = vmatpush.msra.mxu0 0.0
  %917 = vmatpush.msra.mxu0 0.0
  %v918 = vand.u32 %v746, 4294901760
  %v919 = vsub.f32 %v746, %v918
  %920 = vmatpush.msra.mxu0 %v919
  %v921 = vand.u32 %v745, 4294901760
  %v922 = vsub.f32 %v745, %v921
  %923 = vmatpush.msra.mxu0 %v922
  %v924 = vand.u32 %v744, 4294901760
  %v925 = vsub.f32 %v744, %v924
  %926 = vmatpush.msra.mxu0 %v925
  %v927 = vand.u32 %v743, 4294901760
  %v928 = vsub.f32 %v743, %v927
  %929 = vmatpush.msra.mxu0 %v928
  %v930 = vand.u32 %v742, 4294901760
  %v931 = vsub.f32 %v742, %v930
  %932 = vmatpush.msra.mxu0 %v931
  %v933 = vand.u32 %v741, 4294901760
  %v934 = vsub.f32 %v741, %v933
  %935 = vmatpush.msra.mxu0 %v934
  %v936 = vand.u32 %v740, 4294901760
  %v937 = vsub.f32 %v740, %v936
  %938 = vmatpush.msra.mxu0 %v937
  %v939 = vand.u32 %v739, 4294901760
  %v940 = vsub.f32 %v739, %v939
  %941 = vmatpush.msra.mxu0 %v940
  %v942 = vand.u32 %v769, 4294901760
  %v943 = vsub.f32 %v769, %v942
  %944 = vmatmul.f32.gmra.mxu0 %v943
  %v945 = vpop.f32.mrf.mxu0
  %v946 = vadd.f32 %v896, %v945
  %v947 = vand.u32 %v772, 4294901760
  %v948 = vsub.f32 %v772, %v947
  %949 = vmatmul.f32.gmra.mxu0 %v948
  %v950 = vpop.f32.mrf.mxu0
  %v951 = vadd.f32 %v900, %v950
  %v952 = vand.u32 %v775, 4294901760
  %v953 = vsub.f32 %v775, %v952
  %954 = vmatmul.f32.gmra.mxu0 %v953
  %v955 = vpop.f32.mrf.mxu0
  %v956 = vadd.f32 %v904, %v955
  %v957 = vand.u32 %v778, 4294901760
  %v958 = vsub.f32 %v778, %v957
  %959 = vmatmul.f32.gmra.mxu0 %v958
  %v960 = vpop.f32.mrf.mxu0
  %v961 = vadd.f32 %v908, %v960
  %962 = vdwg.mxu0
  %963 = vmatpush.msra.mxu0 0.0
  %964 = vmatpush.msra.mxu0 0.0
  %965 = vmatpush.msra.mxu0 0.0
  %966 = vmatpush.msra.mxu0 0.0
  %967 = vmatpush.msra.mxu0 0.0
  %968 = vmatpush.msra.mxu0 0.0
  %969 = vmatpush.msra.mxu0 0.0
  %970 = vmatpush.msra.mxu0 0.0
  %v971 = vand.u32 %v746, 4294901760
  %972 = vmatpush.msra.mxu0 %v971
  %v973 = vand.u32 %v745, 4294901760
  %974 = vmatpush.msra.mxu0 %v973
  %v975 = vand.u32 %v744, 4294901760
  %976 = vmatpush.msra.mxu0 %v975
  %v977 = vand.u32 %v743, 4294901760
  %978 = vmatpush.msra.mxu0 %v977
  %v979 = vand.u32 %v742, 4294901760
  %980 = vmatpush.msra.mxu0 %v979
  %v981 = vand.u32 %v741, 4294901760
  %982 = vmatpush.msra.mxu0 %v981
  %v983 = vand.u32 %v740, 4294901760
  %984 = vmatpush.msra.mxu0 %v983
  %v985 = vand.u32 %v739, 4294901760
  %986 = vmatpush.msra.mxu0 %v985
  %v987 = vand.u32 %v769, 4294901760
  %v988 = vsub.f32 %v769, %v987
  %v989 = vand.u32 %v988, 4294901760
  %990 = vmatmul.f32.gmra.mxu0 %v989
  %v991 = vpop.f32.mrf.mxu0
  %v992 = vadd.f32 %v946, %v991
  %v993 = vand.u32 %v772, 4294901760
  %v994 = vsub.f32 %v772, %v993
  %v995 = vand.u32 %v994, 4294901760
  %996 = vmatmul.f32.gmra.mxu0 %v995
  %v997 = vpop.f32.mrf.mxu0
  %v998 = vadd.f32 %v951, %v997
  %v999 = vand.u32 %v775, 4294901760
  %v1000 = vsub.f32 %v775, %v999
  %v1001 = vand.u32 %v1000, 4294901760
  %1002 = vmatmul.f32.gmra.mxu0 %v1001
  %v1003 = vpop.f32.mrf.mxu0
  %v1004 = vadd.f32 %v956, %v1003
  %v1005 = vand.u32 %v778, 4294901760
  %v1006 = vsub.f32 %v778, %v1005
  %v1007 = vand.u32 %v1006, 4294901760
  %1008 = vmatmul.f32.gmra.mxu0 %v1007
  %v1009 = vpop.f32.mrf.mxu0
  %v1010 = vadd.f32 %v961, %v1009
  %1011 = vdwg.mxu0
  %1012 = vmatpush.msra.mxu0 0.0
  %1013 = vmatpush.msra.mxu0 0.0
  %1014 = vmatpush.msra.mxu0 0.0
  %1015 = vmatpush.msra.mxu0 0.0
  %1016 = vmatpush.msra.mxu0 0.0
  %1017 = vmatpush.msra.mxu0 0.0
  %1018 = vmatpush.msra.mxu0 0.0
  %1019 = vmatpush.msra.mxu0 0.0
  %v1020 = vand.u32 %v746, 4294901760
  %v1021 = vsub.f32 %v746, %v1020
  %v1022 = vand.u32 %v1021, 4294901760
  %1023 = vmatpush.msra.mxu0 %v1022
  %v1024 = vand.u32 %v745, 4294901760
  %v1025 = vsub.f32 %v745, %v1024
  %v1026 = vand.u32 %v1025, 4294901760
  %1027 = vmatpush.msra.mxu0 %v1026
  %v1028 = vand.u32 %v744, 4294901760
  %v1029 = vsub.f32 %v744, %v1028
  %v1030 = vand.u32 %v1029, 4294901760
  %1031 = vmatpush.msra.mxu0 %v1030
  %v1032 = vand.u32 %v743, 4294901760
  %v1033 = vsub.f32 %v743, %v1032
  %v1034 = vand.u32 %v1033, 4294901760
  %1035 = vmatpush.msra.mxu0 %v1034
  %v1036 = vand.u32 %v742, 4294901760
  %v1037 = vsub.f32 %v742, %v1036
  %v1038 = vand.u32 %v1037, 4294901760
  %1039 = vmatpush.msra.mxu0 %v1038
  %v1040 = vand.u32 %v741, 4294901760
  %v1041 = vsub.f32 %v741, %v1040
  %v1042 = vand.u32 %v1041, 4294901760
  %1043 = vmatpush.msra.mxu0 %v1042
  %v1044 = vand.u32 %v740, 4294901760
  %v1045 = vsub.f32 %v740, %v1044
  %v1046 = vand.u32 %v1045, 4294901760
  %1047 = vmatpush.msra.mxu0 %v1046
  %v1048 = vand.u32 %v739, 4294901760
  %v1049 = vsub.f32 %v739, %v1048
  %v1050 = vand.u32 %v1049, 4294901760
  %1051 = vmatpush.msra.mxu0 %v1050
  %v1052 = vand.u32 %v769, 4294901760
  %1053 = vmatmul.f32.gmra.mxu0 %v1052
  %v1054 = vpop.f32.mrf.mxu0
  %v1055 = vadd.f32 %v992, %v1054
  %v1056 = vand.u32 %v772, 4294901760
  %1057 = vmatmul.f32.gmra.mxu0 %v1056
  %v1058 = vpop.f32.mrf.mxu0
  %v1059 = vadd.f32 %v998, %v1058
  %v1060 = vand.u32 %v775, 4294901760
  %1061 = vmatmul.f32.gmra.mxu0 %v1060
  %v1062 = vpop.f32.mrf.mxu0
  %v1063 = vadd.f32 %v1004, %v1062
  %v1064 = vand.u32 %v778, 4294901760
  %1065 = vmatmul.f32.gmra.mxu0 %v1064
  %v1066 = vpop.f32.mrf.mxu0
  %v1067 = vadd.f32 %v1010, %v1066
  %1068 = vdwg.mxu0
  %1069 = vmatpush.msra.mxu0 0.0
  %1070 = vmatpush.msra.mxu0 0.0
  %1071 = vmatpush.msra.mxu0 0.0
  %1072 = vmatpush.msra.mxu0 0.0
  %1073 = vmatpush.msra.mxu0 0.0
  %1074 = vmatpush.msra.mxu0 0.0
  %1075 = vmatpush.msra.mxu0 0.0
  %1076 = vmatpush.msra.mxu0 0.0
  %v1077 = vand.u32 %v746, 4294901760
  %1078 = vmatpush.msra.mxu0 %v1077
  %v1079 = vand.u32 %v745, 4294901760
  %1080 = vmatpush.msra.mxu0 %v1079
  %v1081 = vand.u32 %v744, 4294901760
  %1082 = vmatpush.msra.mxu0 %v1081
  %v1083 = vand.u32 %v743, 4294901760
  %1084 = vmatpush.msra.mxu0 %v1083
  %v1085 = vand.u32 %v742, 4294901760
  %1086 = vmatpush.msra.mxu0 %v1085
  %v1087 = vand.u32 %v741, 4294901760
  %1088 = vmatpush.msra.mxu0 %v1087
  %v1089 = vand.u32 %v740, 4294901760
  %1090 = vmatpush.msra.mxu0 %v1089
  %v1091 = vand.u32 %v739, 4294901760
  %1092 = vmatpush.msra.mxu0 %v1091
  %v1093 = vand.u32 %v769, 4294901760
  %1094 = vmatmul.f32.gmra.mxu0 %v1093
  %v1095 = vpop.f32.mrf.mxu0
  %v1096 = vadd.f32 %v1055, %v1095
  %v1097 = vand.u32 %v772, 4294901760
  %1098 = vmatmul.f32.gmra.mxu0 %v1097
  %v1099 = vpop.f32.mrf.mxu0
  %v1100 = vadd.f32 %v1059, %v1099
  %v1101 = vand.u32 %v775, 4294901760
  %1102 = vmatmul.f32.gmra.mxu0 %v1101
  %v1103 = vpop.f32.mrf.mxu0
  %v1104 = vadd.f32 %v1063, %v1103
  %v1105 = vand.u32 %v778, 4294901760
  %1106 = vmatmul.f32.gmra.mxu0 %v1105
  %v1107 = vpop.f32.mrf.mxu0
  %v1108 = vadd.f32 %v1067, %v1107
  %1109 = vdwg.mxu0
  %v1110 = vmax.f32 %v1096, 0.0
  %v1111 = vmax.f32 %v1100, 0.0
  %v1112 = vmax.f32 %v1104, 0.0
  %v1113 = vmax.f32 %v1108, 0.0
  %1114 = vxpose.xlu0.b32.start [1/16] %v1110, 128
  %1115 = vxpose.xlu0.b32.cont [2/16] %v1111, 128
  %1116 = vxpose.xlu0.b32.cont [3/16] %v1112, 128
  %1117 = vxpose.xlu0.b32.cont [4/16] %v1113, 128
  %1118 = vxpose.xlu0.b32.cont [5/16] 0.0, 128
  %1119 = vxpose.xlu0.b32.cont [6/16] 0.0, 128
  %1120 = vxpose.xlu0.b32.cont [7/16] 0.0, 128
  %1121 = vxpose.xlu0.b32.cont [8/16] 0.0, 128
  %1122 = vxpose.xlu0.b32.cont [9/16] 0.0, 128
  %1123 = vxpose.xlu0.b32.cont [10/16] 0.0, 128
  %1124 = vxpose.xlu0.b32.cont [11/16] 0.0, 128
  %1125 = vxpose.xlu0.b32.cont [12/16] 0.0, 128
  %1126 = vxpose.xlu0.b32.cont [13/16] 0.0, 128
  %1127 = vxpose.xlu0.b32.cont [14/16] 0.0, 128
  %1128 = vxpose.xlu0.b32.cont [15/16] 0.0, 128
  %1129 = vxpose.xlu0.b32.end [16/16] 0.0, 128
  %v1130 = vpop.trf.xlu0
  %v1131 = vpop.trf.xlu0
  %v1132 = vpop.trf.xlu0
  %v1133 = vpop.trf.xlu0
  %v1134 = vpop.trf.xlu0
  %v1135 = vpop.trf.xlu0
  %v1136 = vpop.trf.xlu0
  %v1137 = vpop.trf.xlu0
  %v1138 = vpop.trf.xlu0
  %v1139 = vpop.trf.xlu0
  %v1140 = vpop.trf.xlu0
  %v1141 = vpop.trf.xlu0
  %v1142 = vpop.trf.xlu0
  %v1143 = vpop.trf.xlu0
  %v1144 = vpop.trf.xlu0
  %v1145 = vpop.trf.xlu0
  %v1146 = vperm.slane %v50, 0
  %v1147 = vmul.f32 %v1130, %v1146
  %v1148 = vmul.f32 %v1131, %v1146
  %v1149 = vmul.f32 %v1132, %v1146
  %v1150 = vmul.f32 %v1133, %v1146
  %v1151 = vmul.f32 %v1134, %v1146
  %v1152 = vmul.f32 %v1135, %v1146
  %v1153 = vmul.f32 %v1136, %v1146
  %v1154 = vmul.f32 %v1137, %v1146
  %v1155 = vmul.f32 %v1138, %v1146
  %v1156 = vmul.f32 %v1139, %v1146
  %v1157 = vmul.f32 %v1140, %v1146
  %v1158 = vmul.f32 %v1141, %v1146
  %v1159 = vmul.f32 %v1142, %v1146
  %v1160 = vmul.f32 %v1143, %v1146
  %v1161 = vmul.f32 %v1144, %v1146
  %v1162 = vmul.f32 %v1145, %v1146
  %vm1163 = vcmask 261120
  %v1164 = vsel %vm1163, %v1147, 0.0
  %1165 = vadd.xlane.f32.xlu0 %v1164
  %v1166 = vpop.xlane.xlu0 %1165
  %v1167 = vsel %vm1163, %v1148, 0.0
  %1168 = vadd.xlane.f32.xlu0 %v1167
  %v1169 = vpop.xlane.xlu0 %1168
  %v1170 = vsel %vm1163, %v1149, 0.0
  %1171 = vadd.xlane.f32.xlu0 %v1170
  %v1172 = vpop.xlane.xlu0 %1171
  %v1173 = vsel %vm1163, %v1150, 0.0
  %1174 = vadd.xlane.f32.xlu0 %v1173
  %v1175 = vpop.xlane.xlu0 %1174
  %v1176 = vsel %vm1163, %v1151, 0.0
  %1177 = vadd.xlane.f32.xlu0 %v1176
  %v1178 = vpop.xlane.xlu0 %1177
  %v1179 = vsel %vm1163, %v1152, 0.0
  %1180 = vadd.xlane.f32.xlu0 %v1179
  %v1181 = vpop.xlane.xlu0 %1180
  %v1182 = vsel %vm1163, %v1153, 0.0
  %1183 = vadd.xlane.f32.xlu0 %v1182
  %v1184 = vpop.xlane.xlu0 %1183
  %v1185 = vsel %vm1163, %v1154, 0.0
  %1186 = vadd.xlane.f32.xlu0 %v1185
  %v1187 = vpop.xlane.xlu0 %1186
  %v1188 = vsel %vm1163, %v1155, 0.0
  %1189 = vadd.xlane.f32.xlu0 %v1188
  %v1190 = vpop.xlane.xlu0 %1189
  %v1191 = vsel %vm1163, %v1156, 0.0
  %1192 = vadd.xlane.f32.xlu0 %v1191
  %v1193 = vpop.xlane.xlu0 %1192
  %v1194 = vsel %vm1163, %v1157, 0.0
  %1195 = vadd.xlane.f32.xlu0 %v1194
  %v1196 = vpop.xlane.xlu0 %1195
  %v1197 = vsel %vm1163, %v1158, 0.0
  %1198 = vadd.xlane.f32.xlu0 %v1197
  %v1199 = vpop.xlane.xlu0 %1198
  %v1200 = vsel %vm1163, %v1159, 0.0
  %1201 = vadd.xlane.f32.xlu0 %v1200
  %v1202 = vpop.xlane.xlu0 %1201
  %v1203 = vsel %vm1163, %v1160, 0.0
  %1204 = vadd.xlane.f32.xlu0 %v1203
  %v1205 = vpop.xlane.xlu0 %1204
  %v1206 = vsel %vm1163, %v1161, 0.0
  %1207 = vadd.xlane.f32.xlu0 %v1206
  %v1208 = vpop.xlane.xlu0 %1207
  %v1209 = vsel %vm1163, %v1162, 0.0
  %1210 = vadd.xlane.f32.xlu0 %v1209
  %v1211 = vpop.xlane.xlu0 %1210
  %v1212 = vperm.slane %v50, 1
  %v1213 = vmul.f32 %v1130, %v1212
  %v1214 = vmul.f32 %v1131, %v1212
  %v1215 = vmul.f32 %v1132, %v1212
  %v1216 = vmul.f32 %v1133, %v1212
  %v1217 = vmul.f32 %v1134, %v1212
  %v1218 = vmul.f32 %v1135, %v1212
  %v1219 = vmul.f32 %v1136, %v1212
  %v1220 = vmul.f32 %v1137, %v1212
  %v1221 = vmul.f32 %v1138, %v1212
  %v1222 = vmul.f32 %v1139, %v1212
  %v1223 = vmul.f32 %v1140, %v1212
  %v1224 = vmul.f32 %v1141, %v1212
  %v1225 = vmul.f32 %v1142, %v1212
  %v1226 = vmul.f32 %v1143, %v1212
  %v1227 = vmul.f32 %v1144, %v1212
  %v1228 = vmul.f32 %v1145, %v1212
  %v1229 = vsel %vm1163, %v1213, 0.0
  %1230 = vadd.xlane.f32.xlu0 %v1229
  %v1231 = vpop.xlane.xlu0 %1230
  %v1232 = vsel %vm1163, %v1214, 0.0
  %1233 = vadd.xlane.f32.xlu0 %v1232
  %v1234 = vpop.xlane.xlu0 %1233
  %v1235 = vsel %vm1163, %v1215, 0.0
  %1236 = vadd.xlane.f32.xlu0 %v1235
  %v1237 = vpop.xlane.xlu0 %1236
  %v1238 = vsel %vm1163, %v1216, 0.0
  %1239 = vadd.xlane.f32.xlu0 %v1238
  %v1240 = vpop.xlane.xlu0 %1239
  %v1241 = vsel %vm1163, %v1217, 0.0
  %1242 = vadd.xlane.f32.xlu0 %v1241
  %v1243 = vpop.xlane.xlu0 %1242
  %v1244 = vsel %vm1163, %v1218, 0.0
  %1245 = vadd.xlane.f32.xlu0 %v1244
  %v1246 = vpop.xlane.xlu0 %1245
  %v1247 = vsel %vm1163, %v1219, 0.0
  %1248 = vadd.xlane.f32.xlu0 %v1247
  %v1249 = vpop.xlane.xlu0 %1248
  %v1250 = vsel %vm1163, %v1220, 0.0
  %1251 = vadd.xlane.f32.xlu0 %v1250
  %v1252 = vpop.xlane.xlu0 %1251
  %v1253 = vsel %vm1163, %v1221, 0.0
  %1254 = vadd.xlane.f32.xlu0 %v1253
  %v1255 = vpop.xlane.xlu0 %1254
  %v1256 = vsel %vm1163, %v1222, 0.0
  %1257 = vadd.xlane.f32.xlu0 %v1256
  %v1258 = vpop.xlane.xlu0 %1257
  %v1259 = vsel %vm1163, %v1223, 0.0
  %1260 = vadd.xlane.f32.xlu0 %v1259
  %v1261 = vpop.xlane.xlu0 %1260
  %v1262 = vsel %vm1163, %v1224, 0.0
  %1263 = vadd.xlane.f32.xlu0 %v1262
  %v1264 = vpop.xlane.xlu0 %1263
  %v1265 = vsel %vm1163, %v1225, 0.0
  %1266 = vadd.xlane.f32.xlu0 %v1265
  %v1267 = vpop.xlane.xlu0 %1266
  %v1268 = vsel %vm1163, %v1226, 0.0
  %1269 = vadd.xlane.f32.xlu0 %v1268
  %v1270 = vpop.xlane.xlu0 %1269
  %v1271 = vsel %vm1163, %v1227, 0.0
  %1272 = vadd.xlane.f32.xlu0 %v1271
  %v1273 = vpop.xlane.xlu0 %1272
  %v1274 = vsel %vm1163, %v1228, 0.0
  %1275 = vadd.xlane.f32.xlu0 %v1274
  %v1276 = vpop.xlane.xlu0 %1275
  %vm1277 = vcmask 7168
  %v1278 = vsel %vm1277, %v1166, %v1231
  %v1279 = vsel %vm1277, %v1169, %v1234
  %v1280 = vsel %vm1277, %v1172, %v1237
  %v1281 = vsel %vm1277, %v1175, %v1240
  %v1282 = vsel %vm1277, %v1178, %v1243
  %v1283 = vsel %vm1277, %v1181, %v1246
  %v1284 = vsel %vm1277, %v1184, %v1249
  %v1285 = vsel %vm1277, %v1187, %v1252
  %v1286 = vsel %vm1277, %v1190, %v1255
  %v1287 = vsel %vm1277, %v1193, %v1258
  %v1288 = vsel %vm1277, %v1196, %v1261
  %v1289 = vsel %vm1277, %v1199, %v1264
  %v1290 = vsel %vm1277, %v1202, %v1267
  %v1291 = vsel %vm1277, %v1205, %v1270
  %v1292 = vsel %vm1277, %v1208, %v1273
  %v1293 = vsel %vm1277, %v1211, %v1276
  %v1295 = vperm.slane %v51, 0
  %v1297 = vadd.f32 %v1278, %v1295
  %v1298 = vadd.f32 %v1279, %v1295
  %v1299 = vadd.f32 %v1280, %v1295
  %v1300 = vadd.f32 %v1281, %v1295
  %v1301 = vadd.f32 %v1282, %v1295
  %v1302 = vadd.f32 %v1283, %v1295
  %v1303 = vadd.f32 %v1284, %v1295
  %v1304 = vadd.f32 %v1285, %v1295
  %v1305 = vadd.f32 %v1286, %v1295
  %v1306 = vadd.f32 %v1287, %v1295
  %v1307 = vadd.f32 %v1288, %v1295
  %v1308 = vadd.f32 %v1289, %v1295
  %v1309 = vadd.f32 %v1290, %v1295
  %v1310 = vadd.f32 %v1291, %v1295
  %v1311 = vadd.f32 %v1292, %v1295
  %v1312 = vadd.f32 %v1293, %v1295
  %vm1313 = vcmask 15360
  %1314 = vst.msk [vmem:[%s7] sm:$0xff] %vm1313, %v1297
  %1315 = vst.msk [vmem:[%s7 + $0x8] sm:$0xff] %vm1313, %v1298
  %1316 = vst.msk [vmem:[%s7 + $0x10] sm:$0xff] %vm1313, %v1299
  %1317 = vst.msk [vmem:[%s7 + $0x18] sm:$0xff] %vm1313, %v1300
  %1318 = vst.msk [vmem:[%s7 + $0x20] sm:$0xff] %vm1313, %v1301
  %1319 = vst.msk [vmem:[%s7 + $0x28] sm:$0xff] %vm1313, %v1302
  %1320 = vst.msk [vmem:[%s7 + $0x30] sm:$0xff] %vm1313, %v1303
  %1321 = vst.msk [vmem:[%s7 + $0x38] sm:$0xff] %vm1313, %v1304
  %1322 = vst.msk [vmem:[%s7 + $0x40] sm:$0xff] %vm1313, %v1305
  %1323 = vst.msk [vmem:[%s7 + $0x48] sm:$0xff] %vm1313, %v1306
  %1324 = vst.msk [vmem:[%s7 + $0x50] sm:$0xff] %vm1313, %v1307
  %1325 = vst.msk [vmem:[%s7 + $0x58] sm:$0xff] %vm1313, %v1308
  %1326 = vst.msk [vmem:[%s7 + $0x60] sm:$0xff] %vm1313, %v1309
  %1327 = vst.msk [vmem:[%s7 + $0x68] sm:$0xff] %vm1313, %v1310
  %1328 = vst.msk [vmem:[%s7 + $0x70] sm:$0xff] %vm1313, %v1311
  %1329 = vst.msk [vmem:[%s7 + $0x78] sm:$0xff] %vm1313, %v1312
  // Predicated region
  $region30: #{defense_nn_forward.1} parent=0 // pred_check
    _
  $region31: #{defense_nn_forward.1} parent=0 // pred_check_branch
    %1331 = sbr.rel (0) target = $region33
  $region32: #{defense_nn_forward.1} parent=0 // pred_region
    _
  $region33: #{defense_nn_forward.1} parent=0 // pred_fallthru
    _
  // Predicated region
  $region34: #{defense_nn_forward.1} parent=0 // pred_check
    _
  $region35: #{defense_nn_forward.1} parent=0 // pred_check_branch
    %1333 = sbr.rel (0) target = $region37
  $region36: #{defense_nn_forward.1} parent=0 // pred_region
    _
  $region37: #{defense_nn_forward.1} parent=0 // pred_fallthru
    _

</llo_original>
